<compile_context>
chip_gen: v7x
topology: tpu7x:2x2x1
jax: 0.10.0
libtpu: 0.0.40
codegen_flags: <defaults>
</compile_context>

<pallas_src>
import functools

import jax
import jax.numpy as jnp
from jax.experimental import pallas as pl
from jax.experimental.pallas import tpu as pltpu


# ----------------------------------------------------------------------------
# Fused forward kernel: the whole SAE forward for one block of graphs.
# ----------------------------------------------------------------------------
def _fused_sae_kernel(*refs, layers_num, beta, matmul_dtype):
    it = iter(refs)
    x_ref = next(it)                                            # (G, N*Cin)
    conv_e = [(next(it), next(it)) for _ in range(layers_num)]  # folded (M, b)
    fce_w, fce_b = next(it), next(it)
    fcd_w, fcd_b = next(it), next(it)
    conv_d = [(next(it), next(it)) for _ in range(layers_num)]
    fc1_w, fc1_b = next(it), next(it)
    fc2_w, fc2_b = next(it), next(it)
    recon_ref = next(it)                                        # (G, N*Cin)
    cls_ref = next(it)                                          # (G, 1)

    def mm(a, w_ref):
        # MXU matmul; operands optionally bf16 (v6e/v7x), fp32 accumulation.
        return jnp.dot(a.astype(matmul_dtype), w_ref[...].astype(matmul_dtype),
                       preferred_element_type=jnp.float32)

    # ---- encoder graph convs (adjacency pre-folded into the weights) -------
    h = x_ref[...]
    for m_ref, b_ref in conv_e:
        h = jnp.maximum(mm(h, m_ref) + b_ref[...], 0.0)

    # ---- fc_e : latent code z ----------------------------------------------
    z = mm(h, fce_w) + fce_b[...]

    # ---- decoder: fc_d then graph convs ------------------------------------
    hd = mm(z, fcd_w) + fcd_b[...]
    for m_ref, b_ref in conv_d:
        hd = jnp.maximum(mm(hd, m_ref) + b_ref[...], 0.0)

    # ---- softplus(beta) fused (PyTorch threshold=20 linear pass-through) ---
    bx = beta * hd
    sp = jnp.log1p(jnp.exp(jnp.minimum(bx, 20.0))) * (1.0 / beta)
    recon_ref[...] = jnp.where(bx > 20.0, hd, sp)

    # ---- classifier: relu(fc_c1(z)) -> dropout(eval id) -> fc_c2 -----------
    hc = jnp.maximum(mm(z, fc1_w) + fc1_b[...], 0.0)
    cls_ref[...] = mm(hc, fc2_w) + fc2_b[...]


# ----------------------------------------------------------------------------
# Adjacency folding (done once, outside the kernel): per-graph graph conv
#     relu(X@Ws + (A@X)@Wn + b)
# becomes, on the node-major flat layout x_flat[b, n*Cin + c] = X[b, n, c]:
#     relu(x_flat @ (kron(I, Ws) + kron(A.T, Wn)) + tile(b, N))
# ----------------------------------------------------------------------------
def _fold_conv(adj, w_self, w_nbr, b, num_nodes):
    eye = jnp.eye(num_nodes, dtype=jnp.float32)
    m = jnp.kron(eye, w_self) + jnp.kron(adj.T, w_nbr)   # (N*Cin, N*Cout)
    b_tiled = jnp.tile(b, (1, num_nodes))                # (1, N*Cout)
    return m, b_tiled


# ----------------------------------------------------------------------------
# SAE forward: single fused pallas_call, grid over blocks of graphs.
# ----------------------------------------------------------------------------
def sae_forward(params, x, adj, *, num_nodes, in_ch, lat_ch, layers_num,
                matmul_dtype=jnp.float32):
    batch = x.shape[0] // num_nodes
    x_flat = x.reshape(batch, num_nodes * in_ch)   # node-major flatten (free)

    conv_e = [_fold_conv(adj, l["w_self"], l["w_nbr"], l["b"], num_nodes)
              for l in params["conv_e"]]
    conv_d = [_fold_conv(adj, l["w_self"], l["w_nbr"], l["b"], num_nodes)
              for l in params["conv_d"]]

    operands = [x_flat]
    for m, bt in conv_e:
        operands += [m, bt]
    operands += [params["fc_e"]["w"], params["fc_e"]["b"],
                 params["fc_d"]["w"], params["fc_d"]["b"]]
    for m, bt in conv_d:
        operands += [m, bt]
    operands += [params["fc_c1"]["w"], params["fc_c1"]["b"],
                 params["fc_c2"]["w"], params["fc_c2"]["b"]]

    # graphs per grid step: multiple of 8 sublanes when possible, else whole batch
    g = 8 if batch % 8 == 0 else batch
    grid = (batch // g,)

    def row_spec(width):
        return pl.BlockSpec((g, width), lambda i: (i, 0))

    def const_spec(shape):                      # resident block, DMA'd once
        return pl.BlockSpec(shape, lambda i, _nd=len(shape): (0,) * _nd)

    in_specs = [row_spec(num_nodes * in_ch)]
    in_specs += [const_spec(a.shape) for a in operands[1:]]

    out_shape = (jax.ShapeDtypeStruct((batch, num_nodes * in_ch), jnp.float32),
                 jax.ShapeDtypeStruct((batch, 1), jnp.float32))
    out_specs = (row_spec(num_nodes * in_ch),   # lane-dense reconstruction slab
                 row_spec(1))

    kernel = functools.partial(_fused_sae_kernel, layers_num=layers_num,
                               beta=10.0, matmul_dtype=matmul_dtype)

    recon_flat, class_est = pl.pallas_call(
        kernel,
        grid=grid,
        in_specs=in_specs,
        out_specs=out_specs,
        out_shape=out_shape,
        compiler_params=pltpu.CompilerParams(
            dimension_semantics=("parallel",)),
    )(*operands)

    recon = recon_flat.reshape(batch * num_nodes, in_ch)   # back to (B*N, Cin)
    return recon, class_est


# ----------------------------------------------------------------------------
# Deterministic parameter init (PyTorch-Linear-style uniform bounds)
# ----------------------------------------------------------------------------
def _linear_params(key, fan_in, fan_out):
    kw, kb = jax.random.split(key)
    bound = 1.0 / (fan_in ** 0.5)
    return {
        "w": jax.random.uniform(kw, (fan_in, fan_out), jnp.float32, -bound, bound),
        "b": jax.random.uniform(kb, (1, fan_out), jnp.float32, -bound, bound),
    }


def _conv_params(key, cin, cout):
    k1, k2, kb = jax.random.split(key, 3)
    bound = 1.0 / (cin ** 0.5)
    return {
        "w_self": jax.random.uniform(k1, (cin, cout), jnp.float32, -bound, bound),
        "w_nbr": jax.random.uniform(k2, (cin, cout), jnp.float32, -bound, bound),
        "b": jax.random.uniform(kb, (1, cout), jnp.float32, -bound, bound),
    }


def init_sae_params(key, num_nodes, in_ch, hid_ch, lat_ch, layers_num,
                    num_factors, class_hidden_units):
    keys = iter(jax.random.split(key, 4 * layers_num + 8))
    enc_dims = ([(in_ch, hid_ch)] + [(hid_ch, hid_ch)] * (layers_num - 2)
                + [(hid_ch, lat_ch)])
    dec_dims = ([(lat_ch, hid_ch)] + [(hid_ch, hid_ch)] * (layers_num - 2)
                + [(hid_ch, in_ch)])
    return {
        "conv_e": [_conv_params(next(keys), ci, co) for ci, co in enc_dims],
        "conv_d": [_conv_params(next(keys), ci, co) for ci, co in dec_dims],
        "fc_e": _linear_params(next(keys), lat_ch * num_nodes, num_factors),
        "fc_d": _linear_params(next(keys), num_factors, lat_ch * num_nodes),
        "fc_c1": _linear_params(next(keys), num_factors, class_hidden_units),
        "fc_c2": _linear_params(next(keys), class_hidden_units, 1),
    }


# ----------------------------------------------------------------------------
# Test-harness graph (ring over the EEG electrodes) + pure-JAX reference
# ----------------------------------------------------------------------------
def build_ring_adjacency(num_nodes):
    src = jnp.arange(num_nodes)
    dst = (src + 1) % num_nodes
    a = jnp.zeros((num_nodes, num_nodes), jnp.float32)
    a = a.at[dst, src].set(1.0)   # A[dst, src] = 1  =>  'add' aggr via A @ X
    a = a.at[src, dst].set(1.0)
    return a


def _hdot(a, b):
    return jnp.dot(a, b, precision=jax.lax.Precision.HIGHEST)


def sae_forward_reference(params, x, adj, num_nodes, lat_ch):
    """Unfused layer-by-layer reference with an explicit adjacency matmul."""
    batch = x.shape[0] // num_nodes
    block_a = jnp.kron(jnp.eye(batch, dtype=jnp.float32), adj)
    h = x
    for l in params["conv_e"]:
        h = jnp.maximum(_hdot(h, l["w_self"]) + _hdot(_hdot(block_a, h), l["w_nbr"])
                        + l["b"], 0.0)
    z = _hdot(h.reshape(batch, num_nodes * lat_ch), params["fc_e"]["w"]) + params["fc_e"]["b"]
    hd = (_hdot(z, params["fc_d"]["w"]) + params["fc_d"]["b"]).reshape(-1, lat_ch)
    for l in params["conv_d"]:
        hd = jnp.maximum(_hdot(hd, l["w_self"]) + _hdot(_hdot(block_a, hd), l["w_nbr"])
                         + l["b"], 0.0)
    bx = 10.0 * hd
    recon = jnp.where(bx > 20.0, hd, jnp.log1p(jnp.exp(jnp.minimum(bx, 20.0))) / 10.0)
    hc = jnp.maximum(_hdot(z, params["fc_c1"]["w"]) + params["fc_c1"]["b"], 0.0)
    cls = _hdot(hc, params["fc_c2"]["w"]) + params["fc_c2"]["b"]
    return recon, cls


if __name__ == "__main__":
    BATCH = 2
    NUM_NODES = 16
    IN_CH = 4
    HID_CH = 8
    LAT_CH = 4
    LAYERS = 3
    NUM_FACTORS = 6
    CLASS_HIDDEN = 16

    key = jax.random.PRNGKey(0)
    kx, kp = jax.random.split(key)

    x = jax.random.normal(kx, (BATCH * NUM_NODES, IN_CH), jnp.float32)  # data.x
    adj = build_ring_adjacency(NUM_NODES)                               # per-graph A
    params = init_sae_params(kp, NUM_NODES, IN_CH, HID_CH, LAT_CH, LAYERS,
                             NUM_FACTORS, CLASS_HIDDEN)

    fwd = jax.jit(functools.partial(sae_forward, num_nodes=NUM_NODES,
                                    in_ch=IN_CH, lat_ch=LAT_CH,
                                    layers_num=LAYERS))
    recon, class_est = fwd(params, x, adj)
    jax.block_until_ready((recon, class_est))

    # correctness vs unfused pure-JAX reference (explicit adjacency matmuls)
    recon_ref, class_ref = sae_forward_reference(params, x, adj, NUM_NODES, LAT_CH)

    assert recon.shape == (BATCH * NUM_NODES, IN_CH)
    assert class_est.shape == (BATCH, 1)
    assert bool(jnp.all(recon >= 0.0))                      # softplus output
    assert bool(jnp.allclose(recon, recon_ref, atol=5e-2, rtol=5e-2))
    assert bool(jnp.allclose(class_est, class_ref, atol=5e-2, rtol=5e-2))
    print("KERNEL_OK")
</pallas_src>

<mosaic_0001>
module attributes {stable_mosaic.version = 11 : i64} {
  func.func @_fused_sae_kernel(%arg0: i32, %arg1: memref<2x64xf32, #tpu.memory_space<vmem>>, %arg2: memref<64x128xf32, #tpu.memory_space<vmem>>, %arg3: memref<1x128xf32, #tpu.memory_space<vmem>>, %arg4: memref<128x128xf32, #tpu.memory_space<vmem>>, %arg5: memref<1x128xf32, #tpu.memory_space<vmem>>, %arg6: memref<128x64xf32, #tpu.memory_space<vmem>>, %arg7: memref<1x64xf32, #tpu.memory_space<vmem>>, %arg8: memref<64x6xf32, #tpu.memory_space<vmem>>, %arg9: memref<1x6xf32, #tpu.memory_space<vmem>>, %arg10: memref<6x64xf32, #tpu.memory_space<vmem>>, %arg11: memref<1x64xf32, #tpu.memory_space<vmem>>, %arg12: memref<64x128xf32, #tpu.memory_space<vmem>>, %arg13: memref<1x128xf32, #tpu.memory_space<vmem>>, %arg14: memref<128x128xf32, #tpu.memory_space<vmem>>, %arg15: memref<1x128xf32, #tpu.memory_space<vmem>>, %arg16: memref<128x64xf32, #tpu.memory_space<vmem>>, %arg17: memref<1x64xf32, #tpu.memory_space<vmem>>, %arg18: memref<6x16xf32, #tpu.memory_space<vmem>>, %arg19: memref<1x16xf32, #tpu.memory_space<vmem>>, %arg20: memref<16x1xf32, #tpu.memory_space<vmem>>, %arg21: memref<1x1xf32, #tpu.memory_space<vmem>>, %arg22: memref<2x64xf32, #tpu.memory_space<vmem>>, %arg23: memref<2x1xf32, #tpu.memory_space<vmem>>) attributes {dimension_semantics = [#tpu.dimension_semantics<parallel>], iteration_bounds = array<i64: 1>, scalar_prefetch = 0 : i64, scratch_operands = 0 : i64, tpu.core_type = #tpu.core_type<tc>, window_params = [{transform_indices = @transform_0, window_bounds = array<i64: 2, 64>}, {pipeline_mode = #tpu.pipeline_mode<synchronous>, transform_indices = @transform_1, window_bounds = array<i64: 64, 128>}, {pipeline_mode = #tpu.pipeline_mode<synchronous>, transform_indices = @transform_2, window_bounds = array<i64: 1, 128>}, {pipeline_mode = #tpu.pipeline_mode<synchronous>, transform_indices = @transform_3, window_bounds = array<i64: 128, 128>}, {pipeline_mode = #tpu.pipeline_mode<synchronous>, transform_indices = @transform_4, window_bounds = array<i64: 1, 128>}, {pipeline_mode = #tpu.pipeline_mode<synchronous>, transform_indices = @transform_5, window_bounds = array<i64: 128, 64>}, {pipeline_mode = #tpu.pipeline_mode<synchronous>, transform_indices = @transform_6, window_bounds = array<i64: 1, 64>}, {pipeline_mode = #tpu.pipeline_mode<synchronous>, transform_indices = @transform_7, window_bounds = array<i64: 64, 6>}, {pipeline_mode = #tpu.pipeline_mode<synchronous>, transform_indices = @transform_8, window_bounds = array<i64: 1, 6>}, {pipeline_mode = #tpu.pipeline_mode<synchronous>, transform_indices = @transform_9, window_bounds = array<i64: 6, 64>}, {pipeline_mode = #tpu.pipeline_mode<synchronous>, transform_indices = @transform_10, window_bounds = array<i64: 1, 64>}, {pipeline_mode = #tpu.pipeline_mode<synchronous>, transform_indices = @transform_11, window_bounds = array<i64: 64, 128>}, {pipeline_mode = #tpu.pipeline_mode<synchronous>, transform_indices = @transform_12, window_bounds = array<i64: 1, 128>}, {pipeline_mode = #tpu.pipeline_mode<synchronous>, transform_indices = @transform_13, window_bounds = array<i64: 128, 128>}, {pipeline_mode = #tpu.pipeline_mode<synchronous>, transform_indices = @transform_14, window_bounds = array<i64: 1, 128>}, {pipeline_mode = #tpu.pipeline_mode<synchronous>, transform_indices = @transform_15, window_bounds = array<i64: 128, 64>}, {pipeline_mode = #tpu.pipeline_mode<synchronous>, transform_indices = @transform_16, window_bounds = array<i64: 1, 64>}, {pipeline_mode = #tpu.pipeline_mode<synchronous>, transform_indices = @transform_17, window_bounds = array<i64: 6, 16>}, {pipeline_mode = #tpu.pipeline_mode<synchronous>, transform_indices = @transform_18, window_bounds = array<i64: 1, 16>}, {pipeline_mode = #tpu.pipeline_mode<synchronous>, transform_indices = @transform_19, window_bounds = array<i64: 16, 1>}, {pipeline_mode = #tpu.pipeline_mode<synchronous>, transform_indices = @transform_20, window_bounds = array<i64: 1, 1>}, {transform_indices = @transform_21, window_bounds = array<i64: 2, 64>}, {transform_indices = @transform_22, window_bounds = array<i64: 2, 1>}]} {
    %c0 = arith.constant 0 : index
    %c0_0 = arith.constant 0 : index
    %0 = vector.load %arg1[%c0, %c0_0] : memref<2x64xf32, #tpu.memory_space<vmem>>, vector<2x64xf32>
    %c0_1 = arith.constant 0 : index
    %c0_2 = arith.constant 0 : index
    %1 = vector.load %arg2[%c0_1, %c0_2] : memref<64x128xf32, #tpu.memory_space<vmem>>, vector<64x128xf32>
    %cst = arith.constant dense<0.000000e+00> : vector<2x128xf32>
    %2 = tpu.matmul %0, %1, %cst {dimension_numbers = #tpu.dot_dimension_numbers<[1], [0], [0], [1], [0, 0, 1, 1], [], []>} : vector<2x64xf32>, vector<64x128xf32>, vector<2x128xf32> -> vector<2x128xf32>
    %c0_3 = arith.constant 0 : index
    %c0_4 = arith.constant 0 : index
    %3 = vector.load %arg3[%c0_3, %c0_4] : memref<1x128xf32, #tpu.memory_space<vmem>>, vector<1x128xf32>
    %4 = vector.broadcast %3 : vector<1x128xf32> to vector<2x128xf32>
    %5 = arith.addf %2, %4 : vector<2x128xf32>
    %cst_5 = arith.constant 0.000000e+00 : f32
    %6 = vector.broadcast %cst_5 : f32 to vector<2x128xf32>
    %7 = arith.maximumf %5, %6 : vector<2x128xf32>
    %c0_6 = arith.constant 0 : index
    %c0_7 = arith.constant 0 : index
    %8 = vector.load %arg4[%c0_6, %c0_7] : memref<128x128xf32, #tpu.memory_space<vmem>>, vector<128x128xf32>
    %cst_8 = arith.constant dense<0.000000e+00> : vector<2x128xf32>
    %9 = tpu.matmul %7, %8, %cst_8 {dimension_numbers = #tpu.dot_dimension_numbers<[1], [0], [0], [1], [0, 0, 1, 1], [], []>} : vector<2x128xf32>, vector<128x128xf32>, vector<2x128xf32> -> vector<2x128xf32>
    %c0_9 = arith.constant 0 : index
    %c0_10 = arith.constant 0 : index
    %10 = vector.load %arg5[%c0_9, %c0_10] : memref<1x128xf32, #tpu.memory_space<vmem>>, vector<1x128xf32>
    %11 = vector.broadcast %10 : vector<1x128xf32> to vector<2x128xf32>
    %12 = arith.addf %9, %11 : vector<2x128xf32>
    %cst_11 = arith.constant 0.000000e+00 : f32
    %13 = vector.broadcast %cst_11 : f32 to vector<2x128xf32>
    %14 = arith.maximumf %12, %13 : vector<2x128xf32>
    %c0_12 = arith.constant 0 : index
    %c0_13 = arith.constant 0 : index
    %15 = vector.load %arg6[%c0_12, %c0_13] : memref<128x64xf32, #tpu.memory_space<vmem>>, vector<128x64xf32>
    %cst_14 = arith.constant dense<0.000000e+00> : vector<2x64xf32>
    %16 = tpu.matmul %14, %15, %cst_14 {dimension_numbers = #tpu.dot_dimension_numbers<[1], [0], [0], [1], [0, 0, 1, 1], [], []>} : vector<2x128xf32>, vector<128x64xf32>, vector<2x64xf32> -> vector<2x64xf32>
    %c0_15 = arith.constant 0 : index
    %c0_16 = arith.constant 0 : index
    %17 = vector.load %arg7[%c0_15, %c0_16] : memref<1x64xf32, #tpu.memory_space<vmem>>, vector<1x64xf32>
    %18 = vector.broadcast %17 : vector<1x64xf32> to vector<2x64xf32>
    %19 = arith.addf %16, %18 : vector<2x64xf32>
    %cst_17 = arith.constant 0.000000e+00 : f32
    %20 = vector.broadcast %cst_17 : f32 to vector<2x64xf32>
    %21 = arith.maximumf %19, %20 : vector<2x64xf32>
    %c0_18 = arith.constant 0 : index
    %c0_19 = arith.constant 0 : index
    %22 = vector.load %arg8[%c0_18, %c0_19] : memref<64x6xf32, #tpu.memory_space<vmem>>, vector<64x6xf32>
    %cst_20 = arith.constant dense<0.000000e+00> : vector<2x6xf32>
    %23 = tpu.matmul %21, %22, %cst_20 {dimension_numbers = #tpu.dot_dimension_numbers<[1], [0], [0], [1], [0, 0, 1, 1], [], []>} : vector<2x64xf32>, vector<64x6xf32>, vector<2x6xf32> -> vector<2x6xf32>
    %c0_21 = arith.constant 0 : index
    %c0_22 = arith.constant 0 : index
    %24 = vector.load %arg9[%c0_21, %c0_22] : memref<1x6xf32, #tpu.memory_space<vmem>>, vector<1x6xf32>
    %25 = vector.broadcast %24 : vector<1x6xf32> to vector<2x6xf32>
    %26 = arith.addf %23, %25 : vector<2x6xf32>
    %c0_23 = arith.constant 0 : index
    %c0_24 = arith.constant 0 : index
    %27 = vector.load %arg10[%c0_23, %c0_24] : memref<6x64xf32, #tpu.memory_space<vmem>>, vector<6x64xf32>
    %cst_25 = arith.constant dense<0.000000e+00> : vector<2x64xf32>
    %28 = tpu.matmul %26, %27, %cst_25 {dimension_numbers = #tpu.dot_dimension_numbers<[1], [0], [0], [1], [0, 0, 1, 1], [], []>} : vector<2x6xf32>, vector<6x64xf32>, vector<2x64xf32> -> vector<2x64xf32>
    %c0_26 = arith.constant 0 : index
    %c0_27 = arith.constant 0 : index
    %29 = vector.load %arg11[%c0_26, %c0_27] : memref<1x64xf32, #tpu.memory_space<vmem>>, vector<1x64xf32>
    %30 = vector.broadcast %29 : vector<1x64xf32> to vector<2x64xf32>
    %31 = arith.addf %28, %30 : vector<2x64xf32>
    %c0_28 = arith.constant 0 : index
    %c0_29 = arith.constant 0 : index
    %32 = vector.load %arg12[%c0_28, %c0_29] : memref<64x128xf32, #tpu.memory_space<vmem>>, vector<64x128xf32>
    %cst_30 = arith.constant dense<0.000000e+00> : vector<2x128xf32>
    %33 = tpu.matmul %31, %32, %cst_30 {dimension_numbers = #tpu.dot_dimension_numbers<[1], [0], [0], [1], [0, 0, 1, 1], [], []>} : vector<2x64xf32>, vector<64x128xf32>, vector<2x128xf32> -> vector<2x128xf32>
    %c0_31 = arith.constant 0 : index
    %c0_32 = arith.constant 0 : index
    %34 = vector.load %arg13[%c0_31, %c0_32] : memref<1x128xf32, #tpu.memory_space<vmem>>, vector<1x128xf32>
    %35 = vector.broadcast %34 : vector<1x128xf32> to vector<2x128xf32>
    %36 = arith.addf %33, %35 : vector<2x128xf32>
    %cst_33 = arith.constant 0.000000e+00 : f32
    %37 = vector.broadcast %cst_33 : f32 to vector<2x128xf32>
    %38 = arith.maximumf %36, %37 : vector<2x128xf32>
    %c0_34 = arith.constant 0 : index
    %c0_35 = arith.constant 0 : index
    %39 = vector.load %arg14[%c0_34, %c0_35] : memref<128x128xf32, #tpu.memory_space<vmem>>, vector<128x128xf32>
    %cst_36 = arith.constant dense<0.000000e+00> : vector<2x128xf32>
    %40 = tpu.matmul %38, %39, %cst_36 {dimension_numbers = #tpu.dot_dimension_numbers<[1], [0], [0], [1], [0, 0, 1, 1], [], []>} : vector<2x128xf32>, vector<128x128xf32>, vector<2x128xf32> -> vector<2x128xf32>
    %c0_37 = arith.constant 0 : index
    %c0_38 = arith.constant 0 : index
    %41 = vector.load %arg15[%c0_37, %c0_38] : memref<1x128xf32, #tpu.memory_space<vmem>>, vector<1x128xf32>
    %42 = vector.broadcast %41 : vector<1x128xf32> to vector<2x128xf32>
    %43 = arith.addf %40, %42 : vector<2x128xf32>
    %cst_39 = arith.constant 0.000000e+00 : f32
    %44 = vector.broadcast %cst_39 : f32 to vector<2x128xf32>
    %45 = arith.maximumf %43, %44 : vector<2x128xf32>
    %c0_40 = arith.constant 0 : index
    %c0_41 = arith.constant 0 : index
    %46 = vector.load %arg16[%c0_40, %c0_41] : memref<128x64xf32, #tpu.memory_space<vmem>>, vector<128x64xf32>
    %cst_42 = arith.constant dense<0.000000e+00> : vector<2x64xf32>
    %47 = tpu.matmul %45, %46, %cst_42 {dimension_numbers = #tpu.dot_dimension_numbers<[1], [0], [0], [1], [0, 0, 1, 1], [], []>} : vector<2x128xf32>, vector<128x64xf32>, vector<2x64xf32> -> vector<2x64xf32>
    %c0_43 = arith.constant 0 : index
    %c0_44 = arith.constant 0 : index
    %48 = vector.load %arg17[%c0_43, %c0_44] : memref<1x64xf32, #tpu.memory_space<vmem>>, vector<1x64xf32>
    %49 = vector.broadcast %48 : vector<1x64xf32> to vector<2x64xf32>
    %50 = arith.addf %47, %49 : vector<2x64xf32>
    %cst_45 = arith.constant 0.000000e+00 : f32
    %51 = vector.broadcast %cst_45 : f32 to vector<2x64xf32>
    %52 = arith.maximumf %50, %51 : vector<2x64xf32>
    %cst_46 = arith.constant 1.000000e+01 : f32
    %53 = vector.broadcast %cst_46 : f32 to vector<2x64xf32>
    %54 = arith.mulf %53, %52 : vector<2x64xf32>
    %cst_47 = arith.constant 2.000000e+01 : f32
    %55 = vector.broadcast %cst_47 : f32 to vector<2x64xf32>
    %56 = arith.minimumf %54, %55 : vector<2x64xf32>
    %57 = math.exp %56 : vector<2x64xf32>
    %58 = math.log1p %57 : vector<2x64xf32>
    %cst_48 = arith.constant 1.000000e-01 : f32
    %59 = vector.broadcast %cst_48 : f32 to vector<2x64xf32>
    %60 = arith.mulf %58, %59 : vector<2x64xf32>
    %cst_49 = arith.constant 2.000000e+01 : f32
    %61 = vector.broadcast %cst_49 : f32 to vector<2x64xf32>
    %62 = arith.cmpf ogt, %54, %61 : vector<2x64xf32>
    %63 = arith.select %62, %52, %60 : vector<2x64xi1>, vector<2x64xf32>
    %c0_50 = arith.constant 0 : index
    %c0_51 = arith.constant 0 : index
    %64 = vector.load %arg22[%c0_50, %c0_51] : memref<2x64xf32, #tpu.memory_space<vmem>>, vector<2x64xf32>
    tpu.vector_store %arg22[%c0_50, %c0_51], %63 {strides = array<i32>} : memref<2x64xf32, #tpu.memory_space<vmem>>, vector<2x64xf32>,
    %c0_52 = arith.constant 0 : index
    %c0_53 = arith.constant 0 : index
    %65 = vector.load %arg18[%c0_52, %c0_53] : memref<6x16xf32, #tpu.memory_space<vmem>>, vector<6x16xf32>
    %cst_54 = arith.constant dense<0.000000e+00> : vector<2x16xf32>
    %66 = tpu.matmul %26, %65, %cst_54 {dimension_numbers = #tpu.dot_dimension_numbers<[1], [0], [0], [1], [0, 0, 1, 1], [], []>} : vector<2x6xf32>, vector<6x16xf32>, vector<2x16xf32> -> vector<2x16xf32>
    %c0_55 = arith.constant 0 : index
    %c0_56 = arith.constant 0 : index
    %67 = vector.load %arg19[%c0_55, %c0_56] : memref<1x16xf32, #tpu.memory_space<vmem>>, vector<1x16xf32>
    %68 = vector.broadcast %67 : vector<1x16xf32> to vector<2x16xf32>
    %69 = arith.addf %66, %68 : vector<2x16xf32>
    %cst_57 = arith.constant 0.000000e+00 : f32
    %70 = vector.broadcast %cst_57 : f32 to vector<2x16xf32>
    %71 = arith.maximumf %69, %70 : vector<2x16xf32>
    %c0_58 = arith.constant 0 : index
    %c0_59 = arith.constant 0 : index
    %72 = vector.load %arg20[%c0_58, %c0_59] : memref<16x1xf32, #tpu.memory_space<vmem>>, vector<16x1xf32>
    %cst_60 = arith.constant dense<0.000000e+00> : vector<2x1xf32>
    %73 = tpu.matmul %71, %72, %cst_60 {dimension_numbers = #tpu.dot_dimension_numbers<[1], [0], [0], [1], [0, 0, 1, 1], [], []>} : vector<2x16xf32>, vector<16x1xf32>, vector<2x1xf32> -> vector<2x1xf32>
    %c0_61 = arith.constant 0 : index
    %c0_62 = arith.constant 0 : index
    %74 = vector.load %arg21[%c0_61, %c0_62] : memref<1x1xf32, #tpu.memory_space<vmem>>, vector<1x1xf32>
    %75 = vector.broadcast %74 : vector<1x1xf32> to vector<2x1xf32>
    %76 = arith.addf %73, %75 : vector<2x1xf32>
    %c0_63 = arith.constant 0 : index
    %c0_64 = arith.constant 0 : index
    %77 = vector.load %arg23[%c0_63, %c0_64] : memref<2x1xf32, #tpu.memory_space<vmem>>, vector<2x1xf32>
    tpu.vector_store %arg23[%c0_63, %c0_64], %76 {strides = array<i32>} : memref<2x1xf32, #tpu.memory_space<vmem>>, vector<2x1xf32>,
    return
  }
  func.func @transform_0(%arg0: i32) -> (i32, i32) {
    %c0_i32 = arith.constant 0 : i32
    %c0_i32_0 = arith.constant 0 : i32
    return %arg0, %c0_i32 : i32, i32
  }
  func.func @transform_1(%arg0: i32) -> (i32, i32) {
    %c0_i32 = arith.constant 0 : i32
    %c0_i32_0 = arith.constant 0 : i32
    %c0_i32_1 = arith.constant 0 : i32
    return %c0_i32, %c0_i32_0 : i32, i32
  }
  func.func @transform_2(%arg0: i32) -> (i32, i32) {
    %c0_i32 = arith.constant 0 : i32
    %c0_i32_0 = arith.constant 0 : i32
    %c0_i32_1 = arith.constant 0 : i32
    return %c0_i32, %c0_i32_0 : i32, i32
  }
  func.func @transform_3(%arg0: i32) -> (i32, i32) {
    %c0_i32 = arith.constant 0 : i32
    %c0_i32_0 = arith.constant 0 : i32
    %c0_i32_1 = arith.constant 0 : i32
    return %c0_i32, %c0_i32_0 : i32, i32
  }
  func.func @transform_4(%arg0: i32) -> (i32, i32) {
    %c0_i32 = arith.constant 0 : i32
    %c0_i32_0 = arith.constant 0 : i32
    %c0_i32_1 = arith.constant 0 : i32
    return %c0_i32, %c0_i32_0 : i32, i32
  }
  func.func @transform_5(%arg0: i32) -> (i32, i32) {
    %c0_i32 = arith.constant 0 : i32
    %c0_i32_0 = arith.constant 0 : i32
    %c0_i32_1 = arith.constant 0 : i32
    return %c0_i32, %c0_i32_0 : i32, i32
  }
  func.func @transform_6(%arg0: i32) -> (i32, i32) {
    %c0_i32 = arith.constant 0 : i32
    %c0_i32_0 = arith.constant 0 : i32
    %c0_i32_1 = arith.constant 0 : i32
    return %c0_i32, %c0_i32_0 : i32, i32
  }
  func.func @transform_7(%arg0: i32) -> (i32, i32) {
    %c0_i32 = arith.constant 0 : i32
    %c0_i32_0 = arith.constant 0 : i32
    %c0_i32_1 = arith.constant 0 : i32
    return %c0_i32, %c0_i32_0 : i32, i32
  }
  func.func @transform_8(%arg0: i32) -> (i32, i32) {
    %c0_i32 = arith.constant 0 : i32
    %c0_i32_0 = arith.constant 0 : i32
    %c0_i32_1 = arith.constant 0 : i32
    return %c0_i32, %c0_i32_0 : i32, i32
  }
  func.func @transform_9(%arg0: i32) -> (i32, i32) {
    %c0_i32 = arith.constant 0 : i32
    %c0_i32_0 = arith.constant 0 : i32
    %c0_i32_1 = arith.constant 0 : i32
    return %c0_i32, %c0_i32_0 : i32, i32
  }
  func.func @transform_10(%arg0: i32) -> (i32, i32) {
    %c0_i32 = arith.constant 0 : i32
    %c0_i32_0 = arith.constant 0 : i32
    %c0_i32_1 = arith.constant 0 : i32
    return %c0_i32, %c0_i32_0 : i32, i32
  }
  func.func @transform_11(%arg0: i32) -> (i32, i32) {
    %c0_i32 = arith.constant 0 : i32
    %c0_i32_0 = arith.constant 0 : i32
    %c0_i32_1 = arith.constant 0 : i32
    return %c0_i32, %c0_i32_0 : i32, i32
  }
  func.func @transform_12(%arg0: i32) -> (i32, i32) {
    %c0_i32 = arith.constant 0 : i32
    %c0_i32_0 = arith.constant 0 : i32
    %c0_i32_1 = arith.constant 0 : i32
    return %c0_i32, %c0_i32_0 : i32, i32
  }
  func.func @transform_13(%arg0: i32) -> (i32, i32) {
    %c0_i32 = arith.constant 0 : i32
    %c0_i32_0 = arith.constant 0 : i32
    %c0_i32_1 = arith.constant 0 : i32
    return %c0_i32, %c0_i32_0 : i32, i32
  }
  func.func @transform_14(%arg0: i32) -> (i32, i32) {
    %c0_i32 = arith.constant 0 : i32
    %c0_i32_0 = arith.constant 0 : i32
    %c0_i32_1 = arith.constant 0 : i32
    return %c0_i32, %c0_i32_0 : i32, i32
  }
  func.func @transform_15(%arg0: i32) -> (i32, i32) {
    %c0_i32 = arith.constant 0 : i32
    %c0_i32_0 = arith.constant 0 : i32
    %c0_i32_1 = arith.constant 0 : i32
    return %c0_i32, %c0_i32_0 : i32, i32
  }
  func.func @transform_16(%arg0: i32) -> (i32, i32) {
    %c0_i32 = arith.constant 0 : i32
    %c0_i32_0 = arith.constant 0 : i32
    %c0_i32_1 = arith.constant 0 : i32
    return %c0_i32, %c0_i32_0 : i32, i32
  }
  func.func @transform_17(%arg0: i32) -> (i32, i32) {
    %c0_i32 = arith.constant 0 : i32
    %c0_i32_0 = arith.constant 0 : i32
    %c0_i32_1 = arith.constant 0 : i32
    return %c0_i32, %c0_i32_0 : i32, i32
  }
  func.func @transform_18(%arg0: i32) -> (i32, i32) {
    %c0_i32 = arith.constant 0 : i32
    %c0_i32_0 = arith.constant 0 : i32
    %c0_i32_1 = arith.constant 0 : i32
    return %c0_i32, %c0_i32_0 : i32, i32
  }
  func.func @transform_19(%arg0: i32) -> (i32, i32) {
    %c0_i32 = arith.constant 0 : i32
    %c0_i32_0 = arith.constant 0 : i32
    %c0_i32_1 = arith.constant 0 : i32
    return %c0_i32, %c0_i32_0 : i32, i32
  }
  func.func @transform_20(%arg0: i32) -> (i32, i32) {
    %c0_i32 = arith.constant 0 : i32
    %c0_i32_0 = arith.constant 0 : i32
    %c0_i32_1 = arith.constant 0 : i32
    return %c0_i32, %c0_i32_0 : i32, i32
  }
  func.func @transform_21(%arg0: i32) -> (i32, i32) {
    %c0_i32 = arith.constant 0 : i32
    %c0_i32_0 = arith.constant 0 : i32
    return %arg0, %c0_i32 : i32, i32
  }
  func.func @transform_22(%arg0: i32) -> (i32, i32) {
    %c0_i32 = arith.constant 0 : i32
    %c0_i32_0 = arith.constant 0 : i32
    return %arg0, %c0_i32 : i32, i32
  }
}

</mosaic_0001>

<llo_original>
// kernel: sae_forward.1
$region0: #{sae_forward.1}
  #allocation0 [shape = 'u32[]', space=smem, size = 0x4, offset = 0x4, fixed_abs, tag = 'smem constant byte address 0x4 - core index']
  #allocation1 [shape = 'u32[144,128]{1,0:T(1,128)}', space=vmem, size = 0x12000, scoped, tag = 'internal scratch']
  #allocation2 [shape = 'f32[1,1]{1,0:T(1,128)S(1)}', space=vmem, size = 0x200, scoped, tag = 'scoped memory for sae_forward.1']
  %s0 = inlined_call_operand.vmem [shape: f32[2,64], index: 0, kind: input, shape index: {}]
  %s1 = inlined_call_operand.vmem [shape: f32[64,128], index: 1, kind: input, shape index: {}]
  %s2 = inlined_call_operand.vmem [shape: f32[1,128], index: 2, kind: input, shape index: {}]
  %s3 = inlined_call_operand.vmem [shape: f32[128,128], index: 3, kind: input, shape index: {}]
  %s4 = inlined_call_operand.vmem [shape: f32[1,128], index: 4, kind: input, shape index: {}]
  %s5 = inlined_call_operand.vmem [shape: f32[128,64], index: 5, kind: input, shape index: {}]
  %s6 = inlined_call_operand.vmem [shape: f32[1,64], index: 6, kind: input, shape index: {}]
  %s7 = inlined_call_operand.vmem [shape: f32[64,6], index: 7, kind: input, shape index: {}]
  %s8 = inlined_call_operand.vmem [shape: f32[1,6], index: 8, kind: input, shape index: {}]
  %s9 = inlined_call_operand.vmem [shape: f32[6,64], index: 9, kind: input, shape index: {}]
  %s10 = inlined_call_operand.vmem [shape: f32[1,64], index: 10, kind: input, shape index: {}]
  %s11 = inlined_call_operand.vmem [shape: f32[64,128], index: 11, kind: input, shape index: {}]
  %s12 = inlined_call_operand.vmem [shape: f32[1,128], index: 12, kind: input, shape index: {}]
  %s13 = inlined_call_operand.vmem [shape: f32[128,128], index: 13, kind: input, shape index: {}]
  %s14 = inlined_call_operand.vmem [shape: f32[1,128], index: 14, kind: input, shape index: {}]
  %s15 = inlined_call_operand.vmem [shape: f32[128,64], index: 15, kind: input, shape index: {}]
  %s16 = inlined_call_operand.vmem [shape: f32[1,64], index: 16, kind: input, shape index: {}]
  %s17 = inlined_call_operand.vmem [shape: f32[6,16], index: 17, kind: input, shape index: {}]
  %s18 = inlined_call_operand.vmem [shape: f32[1,16], index: 18, kind: input, shape index: {}]
  %s19 = inlined_call_operand.vmem [shape: f32[16,1], index: 19, kind: input, shape index: {}]
  %s20 = inlined_call_operand.<no memory space> [shape: f32[1,1], index: 20, kind: input, shape index: {}]
  %s21 = inlined_call_operand.vmem [shape: f32[2,64], index: 21, kind: output, shape index: {0}]
  %s22 = inlined_call_operand.vmem [shape: f32[2,1], index: 22, kind: output, shape index: {1}]
  %23 = xla_tuple %s21, %s22
  %s24 = sld [smem:[#allocation0]]
  $region102: #{sae_forward.1} parent=0
    _
  %s26 = ssub.s32 1, %s24
  %s27 = scalar_select 0, %s26, %s24
  %v28 = vstv %s20
  %29 = vst [vmem:[#allocation2] sm:$0x1] %v28
  // Predicated region
  $region2: #{sae_forward.1} parent=0 // pred_check
    _
  $region3: #{sae_forward.1} parent=0 // pred_check_branch
    %31 = sbr.rel (0) target = $region5
  $region4: #{sae_forward.1} parent=0 // pred_region
    _
  $region5: #{sae_forward.1} parent=0 // pred_fallthru
    _
  // Predicated region
  $region6: #{sae_forward.1} parent=0 // pred_check
    _
  $region7: #{sae_forward.1} parent=0 // pred_check_branch
    %33 = sbr.rel (0) target = $region9
  $region8: #{sae_forward.1} parent=0 // pred_region
    _
  $region9: #{sae_forward.1} parent=0 // pred_fallthru
    _
  // Predicated region
  $region10: #{sae_forward.1} parent=0 // pred_check
    _
  $region11: #{sae_forward.1} parent=0 // pred_check_branch
    %35 = sbr.rel (0) target = $region13
  $region12: #{sae_forward.1} parent=0 // pred_region
    _
  $region13: #{sae_forward.1} parent=0 // pred_fallthru
    _
  // Predicated region
  $region14: #{sae_forward.1} parent=0 // pred_check
    _
  $region15: #{sae_forward.1} parent=0 // pred_check_branch
    %37 = sbr.rel (0) target = $region17
  $region16: #{sae_forward.1} parent=0 // pred_region
    _
  $region17: #{sae_forward.1} parent=0 // pred_fallthru
    _
  // Predicated region
  $region18: #{sae_forward.1} parent=0 // pred_check
    _
  $region19: #{sae_forward.1} parent=0 // pred_check_branch
    %39 = sbr.rel (0) target = $region21
  $region20: #{sae_forward.1} parent=0 // pred_region
    _
  $region21: #{sae_forward.1} parent=0 // pred_fallthru
    _
  // Predicated region
  $region22: #{sae_forward.1} parent=0 // pred_check
    _
  $region23: #{sae_forward.1} parent=0 // pred_check_branch
    %41 = sbr.rel (0) target = $region25
  $region24: #{sae_forward.1} parent=0 // pred_region
    _
  $region25: #{sae_forward.1} parent=0 // pred_fallthru
    _
  // Predicated region
  $region26: #{sae_forward.1} parent=0 // pred_check
    _
  $region27: #{sae_forward.1} parent=0 // pred_check_branch
    %43 = sbr.rel (0) target = $region29
  $region28: #{sae_forward.1} parent=0 // pred_region
    _
  $region29: #{sae_forward.1} parent=0 // pred_fallthru
    _
  // Predicated region
  $region30: #{sae_forward.1} parent=0 // pred_check
    _
  $region31: #{sae_forward.1} parent=0 // pred_check_branch
    %45 = sbr.rel (0) target = $region33
  $region32: #{sae_forward.1} parent=0 // pred_region
    _
  $region33: #{sae_forward.1} parent=0 // pred_fallthru
    _
  // Predicated region
  $region34: #{sae_forward.1} parent=0 // pred_check
    _
  $region35: #{sae_forward.1} parent=0 // pred_check_branch
    %47 = sbr.rel (0) target = $region37
  $region36: #{sae_forward.1} parent=0 // pred_region
    _
  $region37: #{sae_forward.1} parent=0 // pred_fallthru
    _
  // Predicated region
  $region38: #{sae_forward.1} parent=0 // pred_check
    _
  $region39: #{sae_forward.1} parent=0 // pred_check_branch
    %49 = sbr.rel (0) target = $region41
  $region40: #{sae_forward.1} parent=0 // pred_region
    _
  $region41: #{sae_forward.1} parent=0 // pred_fallthru
    _
  // Predicated region
  $region42: #{sae_forward.1} parent=0 // pred_check
    _
  $region43: #{sae_forward.1} parent=0 // pred_check_branch
    %51 = sbr.rel (0) target = $region45
  $region44: #{sae_forward.1} parent=0 // pred_region
    _
  $region45: #{sae_forward.1} parent=0 // pred_fallthru
    _
  // Predicated region
  $region46: #{sae_forward.1} parent=0 // pred_check
    _
  $region47: #{sae_forward.1} parent=0 // pred_check_branch
    %53 = sbr.rel (0) target = $region49
  $region48: #{sae_forward.1} parent=0 // pred_region
    _
  $region49: #{sae_forward.1} parent=0 // pred_fallthru
    _
  // Predicated region
  $region50: #{sae_forward.1} parent=0 // pred_check
    _
  $region51: #{sae_forward.1} parent=0 // pred_check_branch
    %55 = sbr.rel (0) target = $region53
  $region52: #{sae_forward.1} parent=0 // pred_region
    _
  $region53: #{sae_forward.1} parent=0 // pred_fallthru
    _
  // Predicated region
  $region54: #{sae_forward.1} parent=0 // pred_check
    _
  $region55: #{sae_forward.1} parent=0 // pred_check_branch
    %57 = sbr.rel (0) target = $region57
  $region56: #{sae_forward.1} parent=0 // pred_region
    _
  $region57: #{sae_forward.1} parent=0 // pred_fallthru
    _
  // Predicated region
  $region58: #{sae_forward.1} parent=0 // pred_check
    _
  $region59: #{sae_forward.1} parent=0 // pred_check_branch
    %59 = sbr.rel (0) target = $region61
  $region60: #{sae_forward.1} parent=0 // pred_region
    _
  $region61: #{sae_forward.1} parent=0 // pred_fallthru
    _
  // Predicated region
  $region62: #{sae_forward.1} parent=0 // pred_check
    _
  $region63: #{sae_forward.1} parent=0 // pred_check_branch
    %61 = sbr.rel (0) target = $region65
  $region64: #{sae_forward.1} parent=0 // pred_region
    _
  $region65: #{sae_forward.1} parent=0 // pred_fallthru
    _
  // Predicated region
  $region66: #{sae_forward.1} parent=0 // pred_check
    _
  $region67: #{sae_forward.1} parent=0 // pred_check_branch
    %63 = sbr.rel (0) target = $region69
  $region68: #{sae_forward.1} parent=0 // pred_region
    _
  $region69: #{sae_forward.1} parent=0 // pred_fallthru
    _
  // Predicated region
  $region70: #{sae_forward.1} parent=0 // pred_check
    _
  $region71: #{sae_forward.1} parent=0 // pred_check_branch
    %65 = sbr.rel (0) target = $region73
  $region72: #{sae_forward.1} parent=0 // pred_region
    _
  $region73: #{sae_forward.1} parent=0 // pred_fallthru
    _
  // Predicated region
  $region74: #{sae_forward.1} parent=0 // pred_check
    _
  $region75: #{sae_forward.1} parent=0 // pred_check_branch
    %67 = sbr.rel (0) target = $region77
  $region76: #{sae_forward.1} parent=0 // pred_region
    _
  $region77: #{sae_forward.1} parent=0 // pred_fallthru
    _
  // Predicated region
  $region78: #{sae_forward.1} parent=0 // pred_check
    _
  $region79: #{sae_forward.1} parent=0 // pred_check_branch
    %69 = sbr.rel (0) target = $region81
  $region80: #{sae_forward.1} parent=0 // pred_region
    _
  $region81: #{sae_forward.1} parent=0 // pred_fallthru
    _
  // Predicated region
  $region82: #{sae_forward.1} parent=0 // pred_check
    _
  $region83: #{sae_forward.1} parent=0 // pred_check_branch
    %71 = sbr.rel (0) target = $region85
  $region84: #{sae_forward.1} parent=0 // pred_region
    _
  $region85: #{sae_forward.1} parent=0 // pred_fallthru
    _
  %v72 = vld [vmem:[%s0] sm:$0x3]
  %v73 = vld [vmem:[%s1] sm:$0xff]
  %v74 = vld [vmem:[%s1 + $0x8] sm:$0xff]
  %v75 = vld [vmem:[%s1 + $0x10] sm:$0xff]
  %v76 = vld [vmem:[%s1 + $0x18] sm:$0xff]
  %v77 = vld [vmem:[%s1 + $0x20] sm:$0xff]
  %v78 = vld [vmem:[%s1 + $0x28] sm:$0xff]
  %v79 = vld [vmem:[%s1 + $0x30] sm:$0xff]
  %v80 = vld [vmem:[%s1 + $0x38] sm:$0xff]
  %v81 = vld [vmem:[%s2] sm:$0x1]
  %v83 = vlaneseq
  %v84 = vshrl.u32 %v83, 7
  %v85 = vsub.s32 0, %v84
  %v86 = vrot.slane %v81, %v85
  %vm88 = vcmask 523264
  %v90 = vsel %vm88, %v72, 0
  %92 = vmatprep.subr.mxu0 0.0
  %93 = vmatpush1.msra.mxu0 %v73
  %94 = vmatprep.subr.mxu0 0.0
  %95 = vmatpush1.msra.mxu0 %v74
  %96 = vmatprep.subr.mxu0 0.0
  %97 = vmatpush1.msra.mxu0 %v75
  %98 = vmatprep.subr.mxu0 0.0
  %99 = vmatpush1.msra.mxu0 %v76
  %100 = vmatprep.subr.mxu0 0.0
  %101 = vmatpush1.msra.mxu0 %v77
  %102 = vmatprep.subr.mxu0 0.0
  %103 = vmatpush1.msra.mxu0 %v78
  %104 = vmatprep.subr.mxu0 0.0
  %105 = vmatpush1.msra.mxu0 %v79
  %106 = vmatprep.subr.mxu0 0.0
  %107 = vmatpush1.msra.mxu0 %v80
  %108 = vmatprep.subr.mxu0 0.0
  %109 = vmatpush1.msra.mxu0 0.0
  %110 = vmatprep.subr.mxu0 0.0
  %111 = vmatpush1.msra.mxu0 0.0
  %112 = vmatprep.subr.mxu0 0.0
  %113 = vmatpush1.msra.mxu0 0.0
  %114 = vmatprep.subr.mxu0 0.0
  %115 = vmatpush1.msra.mxu0 0.0
  %116 = vmatprep.subr.mxu0 0.0
  %117 = vmatpush1.msra.mxu0 0.0
  %118 = vmatprep.subr.mxu0 0.0
  %119 = vmatpush1.msra.mxu0 0.0
  %120 = vmatprep.subr.mxu0 0.0
  %121 = vmatpush1.msra.mxu0 0.0
  %122 = vmatprep.subr.mxu0 0.0
  %123 = vmatpush1.msra.mxu0 0.0
  %124 = vmatprep.subr.mxu0 0.0
  %125 = vmatpush1.msra.mxu0 0.0
  %126 = vmatprep.subr.mxu0 0.0
  %127 = vmatpush1.msra.mxu0 0.0
  %128 = vmatprep.subr.mxu0 0.0
  %129 = vmatpush1.msra.mxu0 0.0
  %130 = vmatprep.subr.mxu0 0.0
  %131 = vmatpush1.msra.mxu0 0.0
  %132 = vmatprep.subr.mxu0 0.0
  %133 = vmatpush1.msra.mxu0 0.0
  %134 = vmatprep.subr.mxu0 0.0
  %135 = vmatpush1.msra.mxu0 0.0
  %136 = vmatprep.subr.mxu0 0.0
  %137 = vmatpush1.msra.mxu0 0.0
  %138 = vmatprep.subr.mxu0 0.0
  %139 = vmatpush1.msra.mxu0 0.0
  %140 = vmatprep.subr.mxu0 0.0
  %141 = vmatpush1.msra.mxu0 0.0
  %142 = vmatprep.subr.mxu0 0.0
  %143 = vmatpush1.msra.mxu0 0.0
  %144 = vmatprep.subr.mxu0 0.0
  %145 = vmatpush1.msra.mxu0 0.0
  %146 = vmatprep.subr.mxu0 0.0
  %147 = vmatpush1.msra.mxu0 0.0
  %148 = vmatprep.subr.mxu0 0.0
  %149 = vmatpush1.msra.mxu0 0.0
  %150 = vmatprep.subr.mxu0 0.0
  %151 = vmatpush1.msra.mxu0 0.0
  %152 = vmatprep.subr.mxu0 0.0
  %153 = vmatpush1.msra.mxu0 0.0
  %154 = vmatprep.subr.mxu0 0.0
  %155 = vmatpush1.msra.mxu0 0.0
  %156 = vmatprep.mubr.f32.mxu0 0.0
  %157 = vmatmul.mubr.f32.gmra.mrb[0].mxu0 %v90
  %v158 = vpop.f32.mrb[0].mxu0
  %v159 = vadd.f32 %v86, %v158
  %v160 = vpop.f32.mrb[0].mxu0
  %161 = vdwg.mxu0
  %v162 = vmax.f32 %v159, 0.0
  %v163 = vld [vmem:[%s3] sm:$0xff]
  %v164 = vld [vmem:[%s3 + $0x8] sm:$0xff]
  %v165 = vld [vmem:[%s3 + $0x10] sm:$0xff]
  %v166 = vld [vmem:[%s3 + $0x18] sm:$0xff]
  %v167 = vld [vmem:[%s3 + $0x20] sm:$0xff]
  %v168 = vld [vmem:[%s3 + $0x28] sm:$0xff]
  %v169 = vld [vmem:[%s3 + $0x30] sm:$0xff]
  %v170 = vld [vmem:[%s3 + $0x38] sm:$0xff]
  %v171 = vld [vmem:[%s3 + $0x40] sm:$0xff]
  %v172 = vld [vmem:[%s3 + $0x48] sm:$0xff]
  %v173 = vld [vmem:[%s3 + $0x50] sm:$0xff]
  %v174 = vld [vmem:[%s3 + $0x58] sm:$0xff]
  %v175 = vld [vmem:[%s3 + $0x60] sm:$0xff]
  %v176 = vld [vmem:[%s3 + $0x68] sm:$0xff]
  %v177 = vld [vmem:[%s3 + $0x70] sm:$0xff]
  %v178 = vld [vmem:[%s3 + $0x78] sm:$0xff]
  %v179 = vld [vmem:[%s4] sm:$0x1]
  %v181 = vlaneseq
  %v182 = vshrl.u32 %v181, 7
  %v183 = vsub.s32 0, %v182
  %v184 = vrot.slane %v179, %v183
  %186 = vmatprep.subr.mxu0 0.0
  %187 = vmatpush1.msra.mxu0 %v163
  %188 = vmatprep.subr.mxu0 0.0
  %189 = vmatpush1.msra.mxu0 %v164
  %190 = vmatprep.subr.mxu0 0.0
  %191 = vmatpush1.msra.mxu0 %v165
  %192 = vmatprep.subr.mxu0 0.0
  %193 = vmatpush1.msra.mxu0 %v166
  %194 = vmatprep.subr.mxu0 0.0
  %195 = vmatpush1.msra.mxu0 %v167
  %196 = vmatprep.subr.mxu0 0.0
  %197 = vmatpush1.msra.mxu0 %v168
  %198 = vmatprep.subr.mxu0 0.0
  %199 = vmatpush1.msra.mxu0 %v169
  %200 = vmatprep.subr.mxu0 0.0
  %201 = vmatpush1.msra.mxu0 %v170
  %202 = vmatprep.subr.mxu0 0.0
  %203 = vmatpush1.msra.mxu0 %v171
  %204 = vmatprep.subr.mxu0 0.0
  %205 = vmatpush1.msra.mxu0 %v172
  %206 = vmatprep.subr.mxu0 0.0
  %207 = vmatpush1.msra.mxu0 %v173
  %208 = vmatprep.subr.mxu0 0.0
  %209 = vmatpush1.msra.mxu0 %v174
  %210 = vmatprep.subr.mxu0 0.0
  %211 = vmatpush1.msra.mxu0 %v175
  %212 = vmatprep.subr.mxu0 0.0
  %213 = vmatpush1.msra.mxu0 %v176
  %214 = vmatprep.subr.mxu0 0.0
  %215 = vmatpush1.msra.mxu0 %v177
  %216 = vmatprep.subr.mxu0 0.0
  %217 = vmatpush1.msra.mxu0 %v178
  %218 = vmatprep.subr.mxu0 0.0
  %219 = vmatpush1.msra.mxu0 0.0
  %220 = vmatprep.subr.mxu0 0.0
  %221 = vmatpush1.msra.mxu0 0.0
  %222 = vmatprep.subr.mxu0 0.0
  %223 = vmatpush1.msra.mxu0 0.0
  %224 = vmatprep.subr.mxu0 0.0
  %225 = vmatpush1.msra.mxu0 0.0
  %226 = vmatprep.subr.mxu0 0.0
  %227 = vmatpush1.msra.mxu0 0.0
  %228 = vmatprep.subr.mxu0 0.0
  %229 = vmatpush1.msra.mxu0 0.0
  %230 = vmatprep.subr.mxu0 0.0
  %231 = vmatpush1.msra.mxu0 0.0
  %232 = vmatprep.subr.mxu0 0.0
  %233 = vmatpush1.msra.mxu0 0.0
  %234 = vmatprep.subr.mxu0 0.0
  %235 = vmatpush1.msra.mxu0 0.0
  %236 = vmatprep.subr.mxu0 0.0
  %237 = vmatpush1.msra.mxu0 0.0
  %238 = vmatprep.subr.mxu0 0.0
  %239 = vmatpush1.msra.mxu0 0.0
  %240 = vmatprep.subr.mxu0 0.0
  %241 = vmatpush1.msra.mxu0 0.0
  %242 = vmatprep.subr.mxu0 0.0
  %243 = vmatpush1.msra.mxu0 0.0
  %244 = vmatprep.subr.mxu0 0.0
  %245 = vmatpush1.msra.mxu0 0.0
  %246 = vmatprep.subr.mxu0 0.0
  %247 = vmatpush1.msra.mxu0 0.0
  %248 = vmatprep.subr.mxu0 0.0
  %249 = vmatpush1.msra.mxu0 0.0
  %250 = vmatprep.mubr.f32.mxu0 0.0
  %251 = vmatmul.mubr.f32.gmra.mrb[0].mxu0 %v162
  %v252 = vpop.f32.mrb[0].mxu0
  %v253 = vadd.f32 %v184, %v252
  %v254 = vpop.f32.mrb[0].mxu0
  %255 = vdwg.mxu0
  %v256 = vmax.f32 %v253, 0.0
  %v257 = vld [vmem:[%s5] sm:$0xff]
  %v258 = vld [vmem:[%s5 + $0x8] sm:$0xff]
  %v259 = vld [vmem:[%s5 + $0x10] sm:$0xff]
  %v260 = vld [vmem:[%s5 + $0x18] sm:$0xff]
  %v261 = vld [vmem:[%s5 + $0x20] sm:$0xff]
  %v262 = vld [vmem:[%s5 + $0x28] sm:$0xff]
  %v263 = vld [vmem:[%s5 + $0x30] sm:$0xff]
  %v264 = vld [vmem:[%s5 + $0x38] sm:$0xff]
  %v265 = vld [vmem:[%s5 + $0x40] sm:$0xff]
  %v266 = vld [vmem:[%s5 + $0x48] sm:$0xff]
  %v267 = vld [vmem:[%s5 + $0x50] sm:$0xff]
  %v268 = vld [vmem:[%s5 + $0x58] sm:$0xff]
  %v269 = vld [vmem:[%s5 + $0x60] sm:$0xff]
  %v270 = vld [vmem:[%s5 + $0x68] sm:$0xff]
  %v271 = vld [vmem:[%s5 + $0x70] sm:$0xff]
  %v272 = vld [vmem:[%s5 + $0x78] sm:$0xff]
  %v273 = vld [vmem:[%s6] sm:$0x1]
  %v275 = vlaneseq
  %v276 = vshrl.u32 %v275, 7
  %v277 = vsub.s32 0, %v276
  %v278 = vrot.slane %v273, %v277
  %280 = vmatprep.subr.mxu0 0.0
  %281 = vmatpush1.msra.mxu0 %v257
  %282 = vmatprep.subr.mxu0 0.0
  %283 = vmatpush1.msra.mxu0 %v258
  %284 = vmatprep.subr.mxu0 0.0
  %285 = vmatpush1.msra.mxu0 %v259
  %286 = vmatprep.subr.mxu0 0.0
  %287 = vmatpush1.msra.mxu0 %v260
  %288 = vmatprep.subr.mxu0 0.0
  %289 = vmatpush1.msra.mxu0 %v261
  %290 = vmatprep.subr.mxu0 0.0
  %291 = vmatpush1.msra.mxu0 %v262
  %292 = vmatprep.subr.mxu0 0.0
  %293 = vmatpush1.msra.mxu0 %v263
  %294 = vmatprep.subr.mxu0 0.0
  %295 = vmatpush1.msra.mxu0 %v264
  %296 = vmatprep.subr.mxu0 0.0
  %297 = vmatpush1.msra.mxu0 %v265
  %298 = vmatprep.subr.mxu0 0.0
  %299 = vmatpush1.msra.mxu0 %v266
  %300 = vmatprep.subr.mxu0 0.0
  %301 = vmatpush1.msra.mxu0 %v267
  %302 = vmatprep.subr.mxu0 0.0
  %303 = vmatpush1.msra.mxu0 %v268
  %304 = vmatprep.subr.mxu0 0.0
  %305 = vmatpush1.msra.mxu0 %v269
  %306 = vmatprep.subr.mxu0 0.0
  %307 = vmatpush1.msra.mxu0 %v270
  %308 = vmatprep.subr.mxu0 0.0
  %309 = vmatpush1.msra.mxu0 %v271
  %310 = vmatprep.subr.mxu0 0.0
  %311 = vmatpush1.msra.mxu0 %v272
  %312 = vmatprep.subr.mxu0 0.0
  %313 = vmatpush1.msra.mxu0 0.0
  %314 = vmatprep.subr.mxu0 0.0
  %315 = vmatpush1.msra.mxu0 0.0
  %316 = vmatprep.subr.mxu0 0.0
  %317 = vmatpush1.msra.mxu0 0.0
  %318 = vmatprep.subr.mxu0 0.0
  %319 = vmatpush1.msra.mxu0 0.0
  %320 = vmatprep.subr.mxu0 0.0
  %321 = vmatpush1.msra.mxu0 0.0
  %322 = vmatprep.subr.mxu0 0.0
  %323 = vmatpush1.msra.mxu0 0.0
  %324 = vmatprep.subr.mxu0 0.0
  %325 = vmatpush1.msra.mxu0 0.0
  %326 = vmatprep.subr.mxu0 0.0
  %327 = vmatpush1.msra.mxu0 0.0
  %328 = vmatprep.subr.mxu0 0.0
  %329 = vmatpush1.msra.mxu0 0.0
  %330 = vmatprep.subr.mxu0 0.0
  %331 = vmatpush1.msra.mxu0 0.0
  %332 = vmatprep.subr.mxu0 0.0
  %333 = vmatpush1.msra.mxu0 0.0
  %334 = vmatprep.subr.mxu0 0.0
  %335 = vmatpush1.msra.mxu0 0.0
  %336 = vmatprep.subr.mxu0 0.0
  %337 = vmatpush1.msra.mxu0 0.0
  %338 = vmatprep.subr.mxu0 0.0
  %339 = vmatpush1.msra.mxu0 0.0
  %340 = vmatprep.subr.mxu0 0.0
  %341 = vmatpush1.msra.mxu0 0.0
  %342 = vmatprep.subr.mxu0 0.0
  %343 = vmatpush1.msra.mxu0 0.0
  %344 = vmatprep.mubr.f32.mxu0 0.0
  %345 = vmatmul.mubr.f32.gmra.mrb[0].mxu0 %v256
  %v346 = vpop.f32.mrb[0].mxu0
  %v347 = vadd.f32 %v278, %v346
  %v348 = vpop.f32.mrb[0].mxu0
  %349 = vdwg.mxu0
  %v350 = vmax.f32 %v347, 0.0
  %v351 = vld [vmem:[%s7] sm:$0xff]
  %v352 = vld [vmem:[%s7 + $0x8] sm:$0xff]
  %v353 = vld [vmem:[%s7 + $0x10] sm:$0xff]
  %v354 = vld [vmem:[%s7 + $0x18] sm:$0xff]
  %v355 = vld [vmem:[%s7 + $0x20] sm:$0xff]
  %v356 = vld [vmem:[%s7 + $0x28] sm:$0xff]
  %v357 = vld [vmem:[%s7 + $0x30] sm:$0xff]
  %v358 = vld [vmem:[%s7 + $0x38] sm:$0xff]
  %v359 = vld [vmem:[%s8] sm:$0x1]
  %v361 = vlaneseq
  %v362 = vshrl.u32 %v361, 7
  %v363 = vsub.s32 0, %v362
  %v364 = vrot.slane %v359, %v363
  %v367 = vsel %vm88, %v350, 0
  %369 = vmatprep.subr.mxu0 0.0
  %370 = vmatpush1.msra.mxu0 %v351
  %371 = vmatprep.subr.mxu0 0.0
  %372 = vmatpush1.msra.mxu0 %v352
  %373 = vmatprep.subr.mxu0 0.0
  %374 = vmatpush1.msra.mxu0 %v353
  %375 = vmatprep.subr.mxu0 0.0
  %376 = vmatpush1.msra.mxu0 %v354
  %377 = vmatprep.subr.mxu0 0.0
  %378 = vmatpush1.msra.mxu0 %v355
  %379 = vmatprep.subr.mxu0 0.0
  %380 = vmatpush1.msra.mxu0 %v356
  %381 = vmatprep.subr.mxu0 0.0
  %382 = vmatpush1.msra.mxu0 %v357
  %383 = vmatprep.subr.mxu0 0.0
  %384 = vmatpush1.msra.mxu0 %v358
  %385 = vmatprep.subr.mxu0 0.0
  %386 = vmatpush1.msra.mxu0 0.0
  %387 = vmatprep.subr.mxu0 0.0
  %388 = vmatpush1.msra.mxu0 0.0
  %389 = vmatprep.subr.mxu0 0.0
  %390 = vmatpush1.msra.mxu0 0.0
  %391 = vmatprep.subr.mxu0 0.0
  %392 = vmatpush1.msra.mxu0 0.0
  %393 = vmatprep.subr.mxu0 0.0
  %394 = vmatpush1.msra.mxu0 0.0
  %395 = vmatprep.subr.mxu0 0.0
  %396 = vmatpush1.msra.mxu0 0.0
  %397 = vmatprep.subr.mxu0 0.0
  %398 = vmatpush1.msra.mxu0 0.0
  %399 = vmatprep.subr.mxu0 0.0
  %400 = vmatpush1.msra.mxu0 0.0
  %401 = vmatprep.subr.mxu0 0.0
  %402 = vmatpush1.msra.mxu0 0.0
  %403 = vmatprep.subr.mxu0 0.0
  %404 = vmatpush1.msra.mxu0 0.0
  %405 = vmatprep.subr.mxu0 0.0
  %406 = vmatpush1.msra.mxu0 0.0
  %407 = vmatprep.subr.mxu0 0.0
  %408 = vmatpush1.msra.mxu0 0.0
  %409 = vmatprep.subr.mxu0 0.0
  %410 = vmatpush1.msra.mxu0 0.0
  %411 = vmatprep.subr.mxu0 0.0
  %412 = vmatpush1.msra.mxu0 0.0
  %413 = vmatprep.subr.mxu0 0.0
  %414 = vmatpush1.msra.mxu0 0.0
  %415 = vmatprep.subr.mxu0 0.0
  %416 = vmatpush1.msra.mxu0 0.0
  %417 = vmatprep.subr.mxu0 0.0
  %418 = vmatpush1.msra.mxu0 0.0
  %419 = vmatprep.subr.mxu0 0.0
  %420 = vmatpush1.msra.mxu0 0.0
  %421 = vmatprep.subr.mxu0 0.0
  %422 = vmatpush1.msra.mxu0 0.0
  %423 = vmatprep.subr.mxu0 0.0
  %424 = vmatpush1.msra.mxu0 0.0
  %425 = vmatprep.subr.mxu0 0.0
  %426 = vmatpush1.msra.mxu0 0.0
  %427 = vmatprep.subr.mxu0 0.0
  %428 = vmatpush1.msra.mxu0 0.0
  %429 = vmatprep.subr.mxu0 0.0
  %430 = vmatpush1.msra.mxu0 0.0
  %431 = vmatprep.subr.mxu0 0.0
  %432 = vmatpush1.msra.mxu0 0.0
  %433 = vmatprep.mubr.f32.mxu0 0.0
  %434 = vmatmul.mubr.f32.gmra.mrb[0].mxu0 %v367
  %v435 = vpop.f32.mrb[0].mxu0
  %v436 = vadd.f32 %v364, %v435
  %v437 = vpop.f32.mrb[0].mxu0
  %438 = vdwg.mxu0
  %v439 = vld [vmem:[%s9] sm:$0x3f]
  %v440 = vld [vmem:[%s10] sm:$0x1]
  %v442 = vlaneseq
  %v443 = vshrl.u32 %v442, 7
  %v444 = vsub.s32 0, %v443
  %v445 = vrot.slane %v440, %v444
  %vm447 = vcmask 48128
  %v449 = vsel %vm447, %v436, 0
  %vm451 = vcmask 1045504
  %v453 = vsel %vm451, %v439, 0
  %455 = vmatprep.subr.mxu0 0.0
  %456 = vmatpush1.msra.mxu0 %v453
  %457 = vmatprep.subr.mxu0 0.0
  %458 = vmatpush1.msra.mxu0 0.0
  %459 = vmatprep.subr.mxu0 0.0
  %460 = vmatpush1.msra.mxu0 0.0
  %461 = vmatprep.subr.mxu0 0.0
  %462 = vmatpush1.msra.mxu0 0.0
  %463 = vmatprep.subr.mxu0 0.0
  %464 = vmatpush1.msra.mxu0 0.0
  %465 = vmatprep.subr.mxu0 0.0
  %466 = vmatpush1.msra.mxu0 0.0
  %467 = vmatprep.subr.mxu0 0.0
  %468 = vmatpush1.msra.mxu0 0.0
  %469 = vmatprep.subr.mxu0 0.0
  %470 = vmatpush1.msra.mxu0 0.0
  %471 = vmatprep.subr.mxu0 0.0
  %472 = vmatpush1.msra.mxu0 0.0
  %473 = vmatprep.subr.mxu0 0.0
  %474 = vmatpush1.msra.mxu0 0.0
  %475 = vmatprep.subr.mxu0 0.0
  %476 = vmatpush1.msra.mxu0 0.0
  %477 = vmatprep.subr.mxu0 0.0
  %478 = vmatpush1.msra.mxu0 0.0
  %479 = vmatprep.subr.mxu0 0.0
  %480 = vmatpush1.msra.mxu0 0.0
  %481 = vmatprep.subr.mxu0 0.0
  %482 = vmatpush1.msra.mxu0 0.0
  %483 = vmatprep.subr.mxu0 0.0
  %484 = vmatpush1.msra.mxu0 0.0
  %485 = vmatprep.subr.mxu0 0.0
  %486 = vmatpush1.msra.mxu0 0.0
  %487 = vmatprep.subr.mxu0 0.0
  %488 = vmatpush1.msra.mxu0 0.0
  %489 = vmatprep.subr.mxu0 0.0
  %490 = vmatpush1.msra.mxu0 0.0
  %491 = vmatprep.subr.mxu0 0.0
  %492 = vmatpush1.msra.mxu0 0.0
  %493 = vmatprep.subr.mxu0 0.0
  %494 = vmatpush1.msra.mxu0 0.0
  %495 = vmatprep.subr.mxu0 0.0
  %496 = vmatpush1.msra.mxu0 0.0
  %497 = vmatprep.subr.mxu0 0.0
  %498 = vmatpush1.msra.mxu0 0.0
  %499 = vmatprep.subr.mxu0 0.0
  %500 = vmatpush1.msra.mxu0 0.0
  %501 = vmatprep.subr.mxu0 0.0
  %502 = vmatpush1.msra.mxu0 0.0
  %503 = vmatprep.subr.mxu0 0.0
  %504 = vmatpush1.msra.mxu0 0.0
  %505 = vmatprep.subr.mxu0 0.0
  %506 = vmatpush1.msra.mxu0 0.0
  %507 = vmatprep.subr.mxu0 0.0
  %508 = vmatpush1.msra.mxu0 0.0
  %509 = vmatprep.subr.mxu0 0.0
  %510 = vmatpush1.msra.mxu0 0.0
  %511 = vmatprep.subr.mxu0 0.0
  %512 = vmatpush1.msra.mxu0 0.0
  %513 = vmatprep.subr.mxu0 0.0
  %514 = vmatpush1.msra.mxu0 0.0
  %515 = vmatprep.subr.mxu0 0.0
  %516 = vmatpush1.msra.mxu0 0.0
  %517 = vmatprep.subr.mxu0 0.0
  %518 = vmatpush1.msra.mxu0 0.0
  %519 = vmatprep.mubr.f32.mxu0 0.0
  %520 = vmatmul.mubr.f32.gmra.mrb[0].mxu0 %v449
  %v521 = vpop.f32.mrb[0].mxu0
  %v522 = vadd.f32 %v445, %v521
  %v523 = vpop.f32.mrb[0].mxu0
  %524 = vdwg.mxu0
  %v525 = vld [vmem:[%s11] sm:$0xff]
  %v526 = vld [vmem:[%s11 + $0x8] sm:$0xff]
  %v527 = vld [vmem:[%s11 + $0x10] sm:$0xff]
  %v528 = vld [vmem:[%s11 + $0x18] sm:$0xff]
  %v529 = vld [vmem:[%s11 + $0x20] sm:$0xff]
  %v530 = vld [vmem:[%s11 + $0x28] sm:$0xff]
  %v531 = vld [vmem:[%s11 + $0x30] sm:$0xff]
  %v532 = vld [vmem:[%s11 + $0x38] sm:$0xff]
  %v533 = vld [vmem:[%s12] sm:$0x1]
  %v535 = vlaneseq
  %v536 = vshrl.u32 %v535, 7
  %v537 = vsub.s32 0, %v536
  %v538 = vrot.slane %v533, %v537
  %v541 = vsel %vm88, %v522, 0
  %543 = vmatprep.subr.mxu0 0.0
  %544 = vmatpush1.msra.mxu0 %v525
  %545 = vmatprep.subr.mxu0 0.0
  %546 = vmatpush1.msra.mxu0 %v526
  %547 = vmatprep.subr.mxu0 0.0
  %548 = vmatpush1.msra.mxu0 %v527
  %549 = vmatprep.subr.mxu0 0.0
  %550 = vmatpush1.msra.mxu0 %v528
  %551 = vmatprep.subr.mxu0 0.0
  %552 = vmatpush1.msra.mxu0 %v529
  %553 = vmatprep.subr.mxu0 0.0
  %554 = vmatpush1.msra.mxu0 %v530
  %555 = vmatprep.subr.mxu0 0.0
  %556 = vmatpush1.msra.mxu0 %v531
  %557 = vmatprep.subr.mxu0 0.0
  %558 = vmatpush1.msra.mxu0 %v532
  %559 = vmatprep.subr.mxu0 0.0
  %560 = vmatpush1.msra.mxu0 0.0
  %561 = vmatprep.subr.mxu0 0.0
  %562 = vmatpush1.msra.mxu0 0.0
  %563 = vmatprep.subr.mxu0 0.0
  %564 = vmatpush1.msra.mxu0 0.0
  %565 = vmatprep.subr.mxu0 0.0
  %566 = vmatpush1.msra.mxu0 0.0
  %567 = vmatprep.subr.mxu0 0.0
  %568 = vmatpush1.msra.mxu0 0.0
  %569 = vmatprep.subr.mxu0 0.0
  %570 = vmatpush1.msra.mxu0 0.0
  %571 = vmatprep.subr.mxu0 0.0
  %572 = vmatpush1.msra.mxu0 0.0
  %573 = vmatprep.subr.mxu0 0.0
  %574 = vmatpush1.msra.mxu0 0.0
  %575 = vmatprep.subr.mxu0 0.0
  %576 = vmatpush1.msra.mxu0 0.0
  %577 = vmatprep.subr.mxu0 0.0
  %578 = vmatpush1.msra.mxu0 0.0
  %579 = vmatprep.subr.mxu0 0.0
  %580 = vmatpush1.msra.mxu0 0.0
  %581 = vmatprep.subr.mxu0 0.0
  %582 = vmatpush1.msra.mxu0 0.0
  %583 = vmatprep.subr.mxu0 0.0
  %584 = vmatpush1.msra.mxu0 0.0
  %585 = vmatprep.subr.mxu0 0.0
  %586 = vmatpush1.msra.mxu0 0.0
  %587 = vmatprep.subr.mxu0 0.0
  %588 = vmatpush1.msra.mxu0 0.0
  %589 = vmatprep.subr.mxu0 0.0
  %590 = vmatpush1.msra.mxu0 0.0
  %591 = vmatprep.subr.mxu0 0.0
  %592 = vmatpush1.msra.mxu0 0.0
  %593 = vmatprep.subr.mxu0 0.0
  %594 = vmatpush1.msra.mxu0 0.0
  %595 = vmatprep.subr.mxu0 0.0
  %596 = vmatpush1.msra.mxu0 0.0
  %597 = vmatprep.subr.mxu0 0.0
  %598 = vmatpush1.msra.mxu0 0.0
  %599 = vmatprep.subr.mxu0 0.0
  %600 = vmatpush1.msra.mxu0 0.0
  %601 = vmatprep.subr.mxu0 0.0
  %602 = vmatpush1.msra.mxu0 0.0
  %603 = vmatprep.subr.mxu0 0.0
  %604 = vmatpush1.msra.mxu0 0.0
  %605 = vmatprep.subr.mxu0 0.0
  %606 = vmatpush1.msra.mxu0 0.0
  %607 = vmatprep.mubr.f32.mxu0 0.0
  %608 = vmatmul.mubr.f32.gmra.mrb[0].mxu0 %v541
  %v609 = vpop.f32.mrb[0].mxu0
  %v610 = vadd.f32 %v538, %v609
  %v611 = vpop.f32.mrb[0].mxu0
  %612 = vdwg.mxu0
  %v613 = vmax.f32 %v610, 0.0
  %v614 = vld [vmem:[%s13] sm:$0xff]
  %v615 = vld [vmem:[%s13 + $0x8] sm:$0xff]
  %v616 = vld [vmem:[%s13 + $0x10] sm:$0xff]
  %v617 = vld [vmem:[%s13 + $0x18] sm:$0xff]
  %v618 = vld [vmem:[%s13 + $0x20] sm:$0xff]
  %v619 = vld [vmem:[%s13 + $0x28] sm:$0xff]
  %v620 = vld [vmem:[%s13 + $0x30] sm:$0xff]
  %v621 = vld [vmem:[%s13 + $0x38] sm:$0xff]
  %v622 = vld [vmem:[%s13 + $0x40] sm:$0xff]
  %v623 = vld [vmem:[%s13 + $0x48] sm:$0xff]
  %v624 = vld [vmem:[%s13 + $0x50] sm:$0xff]
  %v625 = vld [vmem:[%s13 + $0x58] sm:$0xff]
  %v626 = vld [vmem:[%s13 + $0x60] sm:$0xff]
  %v627 = vld [vmem:[%s13 + $0x68] sm:$0xff]
  %v628 = vld [vmem:[%s13 + $0x70] sm:$0xff]
  %v629 = vld [vmem:[%s13 + $0x78] sm:$0xff]
  %v630 = vld [vmem:[%s14] sm:$0x1]
  %v632 = vlaneseq
  %v633 = vshrl.u32 %v632, 7
  %v634 = vsub.s32 0, %v633
  %v635 = vrot.slane %v630, %v634
  %637 = vmatprep.subr.mxu0 0.0
  %638 = vmatpush1.msra.mxu0 %v614
  %639 = vmatprep.subr.mxu0 0.0
  %640 = vmatpush1.msra.mxu0 %v615
  %641 = vmatprep.subr.mxu0 0.0
  %642 = vmatpush1.msra.mxu0 %v616
  %643 = vmatprep.subr.mxu0 0.0
  %644 = vmatpush1.msra.mxu0 %v617
  %645 = vmatprep.subr.mxu0 0.0
  %646 = vmatpush1.msra.mxu0 %v618
  %647 = vmatprep.subr.mxu0 0.0
  %648 = vmatpush1.msra.mxu0 %v619
  %649 = vmatprep.subr.mxu0 0.0
  %650 = vmatpush1.msra.mxu0 %v620
  %651 = vmatprep.subr.mxu0 0.0
  %652 = vmatpush1.msra.mxu0 %v621
  %653 = vmatprep.subr.mxu0 0.0
  %654 = vmatpush1.msra.mxu0 %v622
  %655 = vmatprep.subr.mxu0 0.0
  %656 = vmatpush1.msra.mxu0 %v623
  %657 = vmatprep.subr.mxu0 0.0
  %658 = vmatpush1.msra.mxu0 %v624
  %659 = vmatprep.subr.mxu0 0.0
  %660 = vmatpush1.msra.mxu0 %v625
  %661 = vmatprep.subr.mxu0 0.0
  %662 = vmatpush1.msra.mxu0 %v626
  %663 = vmatprep.subr.mxu0 0.0
  %664 = vmatpush1.msra.mxu0 %v627
  %665 = vmatprep.subr.mxu0 0.0
  %666 = vmatpush1.msra.mxu0 %v628
  %667 = vmatprep.subr.mxu0 0.0
  %668 = vmatpush1.msra.mxu0 %v629
  %669 = vmatprep.subr.mxu0 0.0
  %670 = vmatpush1.msra.mxu0 0.0
  %671 = vmatprep.subr.mxu0 0.0
  %672 = vmatpush1.msra.mxu0 0.0
  %673 = vmatprep.subr.mxu0 0.0
  %674 = vmatpush1.msra.mxu0 0.0
  %675 = vmatprep.subr.mxu0 0.0
  %676 = vmatpush1.msra.mxu0 0.0
  %677 = vmatprep.subr.mxu0 0.0
  %678 = vmatpush1.msra.mxu0 0.0
  %679 = vmatprep.subr.mxu0 0.0
  %680 = vmatpush1.msra.mxu0 0.0
  %681 = vmatprep.subr.mxu0 0.0
  %682 = vmatpush1.msra.mxu0 0.0
  %683 = vmatprep.subr.mxu0 0.0
  %684 = vmatpush1.msra.mxu0 0.0
  %685 = vmatprep.subr.mxu0 0.0
  %686 = vmatpush1.msra.mxu0 0.0
  %687 = vmatprep.subr.mxu0 0.0
  %688 = vmatpush1.msra.mxu0 0.0
  %689 = vmatprep.subr.mxu0 0.0
  %690 = vmatpush1.msra.mxu0 0.0
  %691 = vmatprep.subr.mxu0 0.0
  %692 = vmatpush1.msra.mxu0 0.0
  %693 = vmatprep.subr.mxu0 0.0
  %694 = vmatpush1.msra.mxu0 0.0
  %695 = vmatprep.subr.mxu0 0.0
  %696 = vmatpush1.msra.mxu0 0.0
  %697 = vmatprep.subr.mxu0 0.0
  %698 = vmatpush1.msra.mxu0 0.0
  %699 = vmatprep.subr.mxu0 0.0
  %700 = vmatpush1.msra.mxu0 0.0
  %701 = vmatprep.mubr.f32.mxu0 0.0
  %702 = vmatmul.mubr.f32.gmra.mrb[0].mxu0 %v613
  %v703 = vpop.f32.mrb[0].mxu0
  %v704 = vadd.f32 %v635, %v703
  %v705 = vpop.f32.mrb[0].mxu0
  %706 = vdwg.mxu0
  %v707 = vmax.f32 %v704, 0.0
  %v708 = vld [vmem:[%s15] sm:$0xff]
  %v709 = vld [vmem:[%s15 + $0x8] sm:$0xff]
  %v710 = vld [vmem:[%s15 + $0x10] sm:$0xff]
  %v711 = vld [vmem:[%s15 + $0x18] sm:$0xff]
  %v712 = vld [vmem:[%s15 + $0x20] sm:$0xff]
  %v713 = vld [vmem:[%s15 + $0x28] sm:$0xff]
  %v714 = vld [vmem:[%s15 + $0x30] sm:$0xff]
  %v715 = vld [vmem:[%s15 + $0x38] sm:$0xff]
  %v716 = vld [vmem:[%s15 + $0x40] sm:$0xff]
  %v717 = vld [vmem:[%s15 + $0x48] sm:$0xff]
  %v718 = vld [vmem:[%s15 + $0x50] sm:$0xff]
  %v719 = vld [vmem:[%s15 + $0x58] sm:$0xff]
  %v720 = vld [vmem:[%s15 + $0x60] sm:$0xff]
  %v721 = vld [vmem:[%s15 + $0x68] sm:$0xff]
  %v722 = vld [vmem:[%s15 + $0x70] sm:$0xff]
  %v723 = vld [vmem:[%s15 + $0x78] sm:$0xff]
  %v724 = vld [vmem:[%s16] sm:$0x1]
  %v726 = vlaneseq
  %v727 = vshrl.u32 %v726, 7
  %v728 = vsub.s32 0, %v727
  %v729 = vrot.slane %v724, %v728
  %731 = vmatprep.subr.mxu0 0.0
  %732 = vmatpush1.msra.mxu0 %v708
  %733 = vmatprep.subr.mxu0 0.0
  %734 = vmatpush1.msra.mxu0 %v709
  %735 = vmatprep.subr.mxu0 0.0
  %736 = vmatpush1.msra.mxu0 %v710
  %737 = vmatprep.subr.mxu0 0.0
  %738 = vmatpush1.msra.mxu0 %v711
  %739 = vmatprep.subr.mxu0 0.0
  %740 = vmatpush1.msra.mxu0 %v712
  %741 = vmatprep.subr.mxu0 0.0
  %742 = vmatpush1.msra.mxu0 %v713
  %743 = vmatprep.subr.mxu0 0.0
  %744 = vmatpush1.msra.mxu0 %v714
  %745 = vmatprep.subr.mxu0 0.0
  %746 = vmatpush1.msra.mxu0 %v715
  %747 = vmatprep.subr.mxu0 0.0
  %748 = vmatpush1.msra.mxu0 %v716
  %749 = vmatprep.subr.mxu0 0.0
  %750 = vmatpush1.msra.mxu0 %v717
  %751 = vmatprep.subr.mxu0 0.0
  %752 = vmatpush1.msra.mxu0 %v718
  %753 = vmatprep.subr.mxu0 0.0
  %754 = vmatpush1.msra.mxu0 %v719
  %755 = vmatprep.subr.mxu0 0.0
  %756 = vmatpush1.msra.mxu0 %v720
  %757 = vmatprep.subr.mxu0 0.0
  %758 = vmatpush1.msra.mxu0 %v721
  %759 = vmatprep.subr.mxu0 0.0
  %760 = vmatpush1.msra.mxu0 %v722
  %761 = vmatprep.subr.mxu0 0.0
  %762 = vmatpush1.msra.mxu0 %v723
  %763 = vmatprep.subr.mxu0 0.0
  %764 = vmatpush1.msra.mxu0 0.0
  %765 = vmatprep.subr.mxu0 0.0
  %766 = vmatpush1.msra.mxu0 0.0
  %767 = vmatprep.subr.mxu0 0.0
  %768 = vmatpush1.msra.mxu0 0.0
  %769 = vmatprep.subr.mxu0 0.0
  %770 = vmatpush1.msra.mxu0 0.0
  %771 = vmatprep.subr.mxu0 0.0
  %772 = vmatpush1.msra.mxu0 0.0
  %773 = vmatprep.subr.mxu0 0.0
  %774 = vmatpush1.msra.mxu0 0.0
  %775 = vmatprep.subr.mxu0 0.0
  %776 = vmatpush1.msra.mxu0 0.0
  %777 = vmatprep.subr.mxu0 0.0
  %778 = vmatpush1.msra.mxu0 0.0
  %779 = vmatprep.subr.mxu0 0.0
  %780 = vmatpush1.msra.mxu0 0.0
  %781 = vmatprep.subr.mxu0 0.0
  %782 = vmatpush1.msra.mxu0 0.0
  %783 = vmatprep.subr.mxu0 0.0
  %784 = vmatpush1.msra.mxu0 0.0
  %785 = vmatprep.subr.mxu0 0.0
  %786 = vmatpush1.msra.mxu0 0.0
  %787 = vmatprep.subr.mxu0 0.0
  %788 = vmatpush1.msra.mxu0 0.0
  %789 = vmatprep.subr.mxu0 0.0
  %790 = vmatpush1.msra.mxu0 0.0
  %791 = vmatprep.subr.mxu0 0.0
  %792 = vmatpush1.msra.mxu0 0.0
  %793 = vmatprep.subr.mxu0 0.0
  %794 = vmatpush1.msra.mxu0 0.0
  %795 = vmatprep.mubr.f32.mxu0 0.0
  %796 = vmatmul.mubr.f32.gmra.mrb[0].mxu0 %v707
  %v797 = vpop.f32.mrb[0].mxu0
  %v798 = vadd.f32 %v729, %v797
  %v799 = vpop.f32.mrb[0].mxu0
  %800 = vdwg.mxu0
  %v801 = vmax.f32 %v798, 0.0
  %v802 = vmul.f32 %v801, 10.0
  %v803 = vmin.f32 %v802, 20.0
  %v804 = vmul.f32 %v803, 1.442695
  %v805 = vpow.pop %v804
  %v806 = vadd.f32 %v805, 1.0
  %v807 = vlog2.pop %v806
  %v808 = vmul.f32 %v807, 0.6931472
  %v809 = vmul.f32 -0.5, %v805
  %v810 = vadd.f32 %v809, 1.0
  %v811 = vmul.f32 %v810, %v805
  %v812 = vand.u32 2147483647, %v805
  %vm813 = vcmp.lt.f32.partialorder %v812, 0.0004427343
  %v814 = vsel %vm813, %v811, %v808
  %v815 = vmul.f32 %v814, 0.1
  %vm816 = vcmp.gt.f32.partialorder %v802, 20.0
  %v817 = vsel %vm816, %v801, %v815
  %vm818 = vcmask 517120
  %819 = vst.msk [vmem:[%s21] sm:$0x3] %vm818, %v817
  %v820 = vld [vmem:[%s17] sm:$0x3f]
  %v821 = vld [vmem:[%s18] sm:$0x1]
  %v823 = vlaneseq
  %v824 = vshrl.u32 %v823, 7
  %v825 = vsub.s32 0, %v824
  %v826 = vrot.slane %v821, %v825
  %v829 = vsel %vm451, %v820, 0
  %831 = vmatprep.subr.mxu0 0.0
  %832 = vmatpush1.msra.mxu0 %v829
  %833 = vmatprep.subr.mxu0 0.0
  %834 = vmatpush1.msra.mxu0 0.0
  %835 = vmatprep.subr.mxu0 0.0
  %836 = vmatpush1.msra.mxu0 0.0
  %837 = vmatprep.subr.mxu0 0.0
  %838 = vmatpush1.msra.mxu0 0.0
  %839 = vmatprep.subr.mxu0 0.0
  %840 = vmatpush1.msra.mxu0 0.0
  %841 = vmatprep.subr.mxu0 0.0
  %842 = vmatpush1.msra.mxu0 0.0
  %843 = vmatprep.subr.mxu0 0.0
  %844 = vmatpush1.msra.mxu0 0.0
  %845 = vmatprep.subr.mxu0 0.0
  %846 = vmatpush1.msra.mxu0 0.0
  %847 = vmatprep.subr.mxu0 0.0
  %848 = vmatpush1.msra.mxu0 0.0
  %849 = vmatprep.subr.mxu0 0.0
  %850 = vmatpush1.msra.mxu0 0.0
  %851 = vmatprep.subr.mxu0 0.0
  %852 = vmatpush1.msra.mxu0 0.0
  %853 = vmatprep.subr.mxu0 0.0
  %854 = vmatpush1.msra.mxu0 0.0
  %855 = vmatprep.subr.mxu0 0.0
  %856 = vmatpush1.msra.mxu0 0.0
  %857 = vmatprep.subr.mxu0 0.0
  %858 = vmatpush1.msra.mxu0 0.0
  %859 = vmatprep.subr.mxu0 0.0
  %860 = vmatpush1.msra.mxu0 0.0
  %861 = vmatprep.subr.mxu0 0.0
  %862 = vmatpush1.msra.mxu0 0.0
  %863 = vmatprep.subr.mxu0 0.0
  %864 = vmatpush1.msra.mxu0 0.0
  %865 = vmatprep.subr.mxu0 0.0
  %866 = vmatpush1.msra.mxu0 0.0
  %867 = vmatprep.subr.mxu0 0.0
  %868 = vmatpush1.msra.mxu0 0.0
  %869 = vmatprep.subr.mxu0 0.0
  %870 = vmatpush1.msra.mxu0 0.0
  %871 = vmatprep.subr.mxu0 0.0
  %872 = vmatpush1.msra.mxu0 0.0
  %873 = vmatprep.subr.mxu0 0.0
  %874 = vmatpush1.msra.mxu0 0.0
  %875 = vmatprep.subr.mxu0 0.0
  %876 = vmatpush1.msra.mxu0 0.0
  %877 = vmatprep.subr.mxu0 0.0
  %878 = vmatpush1.msra.mxu0 0.0
  %879 = vmatprep.subr.mxu0 0.0
  %880 = vmatpush1.msra.mxu0 0.0
  %881 = vmatprep.subr.mxu0 0.0
  %882 = vmatpush1.msra.mxu0 0.0
  %883 = vmatprep.subr.mxu0 0.0
  %884 = vmatpush1.msra.mxu0 0.0
  %885 = vmatprep.subr.mxu0 0.0
  %886 = vmatpush1.msra.mxu0 0.0
  %887 = vmatprep.subr.mxu0 0.0
  %888 = vmatpush1.msra.mxu0 0.0
  %889 = vmatprep.subr.mxu0 0.0
  %890 = vmatpush1.msra.mxu0 0.0
  %891 = vmatprep.subr.mxu0 0.0
  %892 = vmatpush1.msra.mxu0 0.0
  %893 = vmatprep.subr.mxu0 0.0
  %894 = vmatpush1.msra.mxu0 0.0
  %895 = vmatprep.mubr.f32.mxu0 0.0
  %896 = vmatmul.mubr.f32.gmra.mrb[0].mxu0 %v449
  %v897 = vpop.f32.mrb[0].mxu0
  %v898 = vadd.f32 %v826, %v897
  %v899 = vpop.f32.mrb[0].mxu0
  %900 = vdwg.mxu0
  %v901 = vmax.f32 %v898, 0.0
  %v902 = vld [vmem:[%s19] sm:$0xff]
  %v903 = vld [vmem:[%s19 + $0x8] sm:$0xff]
  %v904 = vld [vmem:[#allocation2] sm:$0x1]
  %v906 = vlaneseq
  %v907 = vshrl.u32 %v906, 7
  %v908 = vsub.s32 0, %v907
  %v909 = vrot.slane %v904, %v908
  %vm911 = vcmask 130048
  %v913 = vsel %vm911, %v901, 0
  %915 = vmatprep.subr.mxu0 0.0
  %916 = vmatpush1.msra.mxu0 %v902
  %917 = vmatprep.subr.mxu0 0.0
  %918 = vmatpush1.msra.mxu0 %v903
  %919 = vmatprep.subr.mxu0 0.0
  %920 = vmatpush1.msra.mxu0 0.0
  %921 = vmatprep.subr.mxu0 0.0
  %922 = vmatpush1.msra.mxu0 0.0
  %923 = vmatprep.subr.mxu0 0.0
  %924 = vmatpush1.msra.mxu0 0.0
  %925 = vmatprep.subr.mxu0 0.0
  %926 = vmatpush1.msra.mxu0 0.0
  %927 = vmatprep.subr.mxu0 0.0
  %928 = vmatpush1.msra.mxu0 0.0
  %929 = vmatprep.subr.mxu0 0.0
  %930 = vmatpush1.msra.mxu0 0.0
  %931 = vmatprep.subr.mxu0 0.0
  %932 = vmatpush1.msra.mxu0 0.0
  %933 = vmatprep.subr.mxu0 0.0
  %934 = vmatpush1.msra.mxu0 0.0
  %935 = vmatprep.subr.mxu0 0.0
  %936 = vmatpush1.msra.mxu0 0.0
  %937 = vmatprep.subr.mxu0 0.0
  %938 = vmatpush1.msra.mxu0 0.0
  %939 = vmatprep.subr.mxu0 0.0
  %940 = vmatpush1.msra.mxu0 0.0
  %941 = vmatprep.subr.mxu0 0.0
  %942 = vmatpush1.msra.mxu0 0.0
  %943 = vmatprep.subr.mxu0 0.0
  %944 = vmatpush1.msra.mxu0 0.0
  %945 = vmatprep.subr.mxu0 0.0
  %946 = vmatpush1.msra.mxu0 0.0
  %947 = vmatprep.subr.mxu0 0.0
  %948 = vmatpush1.msra.mxu0 0.0
  %949 = vmatprep.subr.mxu0 0.0
  %950 = vmatpush1.msra.mxu0 0.0
  %951 = vmatprep.subr.mxu0 0.0
  %952 = vmatpush1.msra.mxu0 0.0
  %953 = vmatprep.subr.mxu0 0.0
  %954 = vmatpush1.msra.mxu0 0.0
  %955 = vmatprep.subr.mxu0 0.0
  %956 = vmatpush1.msra.mxu0 0.0
  %957 = vmatprep.subr.mxu0 0.0
  %958 = vmatpush1.msra.mxu0 0.0
  %959 = vmatprep.subr.mxu0 0.0
  %960 = vmatpush1.msra.mxu0 0.0
  %961 = vmatprep.subr.mxu0 0.0
  %962 = vmatpush1.msra.mxu0 0.0
  %963 = vmatprep.subr.mxu0 0.0
  %964 = vmatpush1.msra.mxu0 0.0
  %965 = vmatprep.subr.mxu0 0.0
  %966 = vmatpush1.msra.mxu0 0.0
  %967 = vmatprep.subr.mxu0 0.0
  %968 = vmatpush1.msra.mxu0 0.0
  %969 = vmatprep.subr.mxu0 0.0
  %970 = vmatpush1.msra.mxu0 0.0
  %971 = vmatprep.subr.mxu0 0.0
  %972 = vmatpush1.msra.mxu0 0.0
  %973 = vmatprep.subr.mxu0 0.0
  %974 = vmatpush1.msra.mxu0 0.0
  %975 = vmatprep.subr.mxu0 0.0
  %976 = vmatpush1.msra.mxu0 0.0
  %977 = vmatprep.subr.mxu0 0.0
  %978 = vmatpush1.msra.mxu0 0.0
  %979 = vmatprep.mubr.f32.mxu0 0.0
  %980 = vmatmul.mubr.f32.gmra.mrb[0].mxu0 %v913
  %v981 = vpop.f32.mrb[0].mxu0
  %v982 = vadd.f32 %v909, %v981
  %v983 = vpop.f32.mrb[0].mxu0
  %984 = vdwg.mxu0
  %vm985 = vcmask 1024
  %986 = vst.msk [vmem:[%s22] sm:$0x3] %vm985, %v982
  // Predicated region
  $region86: #{sae_forward.1} parent=0 // pred_check
    _
  $region87: #{sae_forward.1} parent=0 // pred_check_branch
    %988 = sbr.rel (0) target = $region89
  $region88: #{sae_forward.1} parent=0 // pred_region
    _
  $region89: #{sae_forward.1} parent=0 // pred_fallthru
    _
  // Predicated region
  $region90: #{sae_forward.1} parent=0 // pred_check
    _
  $region91: #{sae_forward.1} parent=0 // pred_check_branch
    %990 = sbr.rel (0) target = $region93
  $region92: #{sae_forward.1} parent=0 // pred_region
    _
  $region93: #{sae_forward.1} parent=0 // pred_fallthru
    _
  // Predicated region
  $region94: #{sae_forward.1} parent=0 // pred_check
    _
  $region95: #{sae_forward.1} parent=0 // pred_check_branch
    %992 = sbr.rel (0) target = $region97
  $region96: #{sae_forward.1} parent=0 // pred_region
    _
  $region97: #{sae_forward.1} parent=0 // pred_fallthru
    _
  // Predicated region
  $region98: #{sae_forward.1} parent=0 // pred_check
    _
  $region99: #{sae_forward.1} parent=0 // pred_check_branch
    %994 = sbr.rel (0) target = $region101
  $region100: #{sae_forward.1} parent=0 // pred_region
    _
  $region101: #{sae_forward.1} parent=0 // pred_fallthru
    _

</llo_original>
